<compile_context>
chip_gen: v7x
topology: tpu7x:2x2x1
jax: 0.10.0
libtpu: 0.0.40
codegen_flags: <defaults>
</compile_context>

<pallas_src>
import jax
import jax.numpy as jnp
from jax.experimental import pallas as pl
from jax.experimental.pallas import tpu as pltpu

# ---- problem sizes (small, consistent with the module) ----------------------
B = 4            # batch
IN_DIM = 16      # self.input_dim
HID_DIM = 32     # self.hidden_dim
PEN_DIM = 32     # penultimate_dim
N_PAT = 8        # n_patterns
NXT_HID = 48     # next_layer.hidden_dim (next_layer.input_dim == HID_DIM)
NXT_NEXT = 24    # next_layer.next_dim  (=> min_dim = min(HID_DIM, NXT_NEXT) = 24)
MIN_DIM = min(HID_DIM, NXT_NEXT)

FUSE_N = NXT_HID + N_PAT + PEN_DIM          # 88 = [w2 | wa | wp] fused output width
LANES = 128                                 # packed lane width for the slab / output

# row offsets inside the packed bf16 weight slab (all multiples of 16 -> bf16-tile aligned)
R_W1 = 0                                    # w1.T           (16, 32)
R_WH = R_W1 + IN_DIM                        # 16 : [w2|wa|wp] (32, 88)
R_WNA = R_WH + HID_DIM                      # 48 : wna.T      (48, 8)
R_DICT = R_WNA + NXT_HID                    # 96 : vstack(-pdict24, npdict24) (16, 24)
R_BIAS = R_DICT + 2 * N_PAT                 # 112: bias row replicated x16    (16, 128)
W_ROWS = R_BIAS + 16                        # 128

# bias lane layout inside the bias rows: [b1(32) | b2(48) | ba(8) | bp(32) | bna(8)]


def _dpl_kernel(x_ref, w_ref, out_ref):
    x = x_ref[...]                                            # (B, 16) bf16

    # static, 16-row-aligned views into the packed bf16 weight slab
    w1t = w_ref[R_W1:R_W1 + IN_DIM, 0:HID_DIM]                # (16, 32)
    w_hid = w_ref[R_WH:R_WH + HID_DIM, 0:FUSE_N]              # (32, 88) [w2.T|wa.T|wp.T]
    wna_t = w_ref[R_WNA:R_WNA + NXT_HID, 0:N_PAT]             # (48, 8)
    d_blk = w_ref[R_DICT:R_DICT + 2 * N_PAT, 0:MIN_DIM]       # (16, 24) [-pdict24 ; npdict24]

    # bias rows are replicated 16x at pack time -> load the full aligned tile, take row 0
    bias = w_ref[R_BIAS:R_BIAS + 16, :].astype(jnp.float32)[0:1, :]     # (1, 128)
    b1 = bias[:, 0:HID_DIM]                                   # (1, 32)
    b_fused = bias[:, HID_DIM:HID_DIM + FUSE_N]               # (1, 88) [b2|ba|bp]
    bna = bias[:, HID_DIM + FUSE_N:LANES]                     # (1, 8)

    # hidden = relu(x @ W1 + b1)
    hidden = jnp.maximum(
        jnp.dot(x, w1t, preferred_element_type=jnp.float32) + b1, 0.0)   # (B, 32) f32

    # one fused MXU pass for the three hidden-consuming linears: [w2 | wa | wp]
    fused = jnp.dot(hidden.astype(jnp.bfloat16), w_hid,
                    preferred_element_type=jnp.float32) + b_fused        # (B, 88)
    actual_next = jnp.maximum(fused[:, 0:NXT_HID], 0.0)        # next_layer.process (lane 0)
    attn = fused[:, NXT_HID:NXT_HID + N_PAT]                   # pattern_attention
    pen_feat = fused[:, NXT_HID + N_PAT:FUSE_N]                # to_penultimate

    # --- softmax over own pattern attention ---
    attn = attn - jnp.max(attn, axis=-1, keepdims=True)
    e = jnp.exp(attn)
    pw = e * pl.reciprocal(jnp.sum(e, axis=-1, keepdims=True), approx=True)      # (B, 8)

    # --- next_layer.next_pattern_attention(actual_next) + softmax ---
    attn_n = jnp.dot(actual_next.astype(jnp.bfloat16), wna_t,
                     preferred_element_type=jnp.float32) + bna
    attn_n = attn_n - jnp.max(attn_n, axis=-1, keepdims=True)
    en = jnp.exp(attn_n)
    pwn = en * pl.reciprocal(jnp.sum(en, axis=-1, keepdims=True), approx=True)   # (B, 8)

    # diff = compressed_next - predicted_next = [pw | pwn] @ vstack(-pdict24, npdict24)
    pw_cat = jnp.concatenate([pw, pwn], axis=-1).astype(jnp.bfloat16)    # (B, 16)
    diff = jnp.dot(pw_cat, d_blk, preferred_element_type=jnp.float32)    # (B, 24)

    # --- prediction error / confidence / routing ---
    pred_error = jnp.mean(diff * diff, axis=1, keepdims=True)            # (B, 1)
    pred_certainty = jnp.abs(pred_error - jnp.mean(pred_error))
    temperature = jax.nn.sigmoid(pred_certainty)
    confidence = 0.5 * (jnp.tanh(-pred_error * temperature) + 1.0)       # (B, 1)
    routing_cost = 0.1 * jnp.mean(confidence * (1.0 - confidence))       # scalar
    pred_error = pred_error + routing_cost

    # --- assemble one lane-dense output row and store once: cont | pen | err(broadcast) ---
    cont = hidden * (1.0 - confidence)                                   # (B, 32)
    pen = pen_feat * confidence                                          # (B, 32)
    err_b = jnp.broadcast_to(pred_error,
                             (cont.shape[0], LANES - HID_DIM - PEN_DIM))  # (B, 64)
    out_ref[...] = jnp.concatenate([cont, pen, err_b], axis=-1)


def pack_params(params):
    """Pack all weights + biases into one (128, 128) bf16 slab.  Call ONCE at init."""
    (w1, b1, wa, ba, pdict, wp, bp, w2, b2, wna, bna, npdict) = params
    wslab = jnp.zeros((W_ROWS, LANES), jnp.float32)
    wslab = wslab.at[R_W1:R_W1 + IN_DIM, 0:HID_DIM].set(w1.T)
    w_hid = jnp.concatenate([w2.T, wa.T, wp.T], axis=1)                  # (32, 88)
    wslab = wslab.at[R_WH:R_WH + HID_DIM, 0:FUSE_N].set(w_hid)
    wslab = wslab.at[R_WNA:R_WNA + NXT_HID, 0:N_PAT].set(wna.T)
    d_blk = jnp.concatenate([-pdict[:, :MIN_DIM], npdict[:, :MIN_DIM]], axis=0)  # (16, 24)
    wslab = wslab.at[R_DICT:R_DICT + 2 * N_PAT, 0:MIN_DIM].set(d_blk)
    bias_row = jnp.concatenate([b1, b2, ba, bp, bna], axis=1)            # (1, 128)
    wslab = wslab.at[R_BIAS:R_BIAS + 16, :].set(jnp.broadcast_to(bias_row, (16, LANES)))
    return wslab.astype(jnp.bfloat16)


def discrete_pattern_layer_forward(x, wslab):
    """Returns (continue_up, penultimate_contribution, pred_error). wslab = pack_params(...)."""
    vm = pl.BlockSpec(memory_space=pltpu.MemorySpace.VMEM)
    out = pl.pallas_call(
        _dpl_kernel,
        out_shape=jax.ShapeDtypeStruct((x.shape[0], LANES), jnp.float32),
        in_specs=[vm, vm],
        out_specs=vm,
    )(x.astype(jnp.bfloat16), wslab)
    cont = out[:, 0:HID_DIM]
    pen = out[:, HID_DIM:HID_DIM + PEN_DIM]
    err = out[:, HID_DIM + PEN_DIM:HID_DIM + PEN_DIM + 1]
    return cont, pen, err


# ---- plain-JAX f32 reference for a sanity check ------------------------------
def _reference(x, params):
    (w1, b1, wa, ba, pdict, wp, bp, w2, b2, wna, bna, npdict) = params
    hidden = jnp.maximum(x @ w1.T + b1, 0.0)
    pw = jax.nn.softmax(hidden @ wa.T + ba, axis=-1)
    predicted_next = pw @ pdict
    actual_next = jnp.maximum(hidden @ w2.T + b2, 0.0)
    pwn = jax.nn.softmax(actual_next @ wna.T + bna, axis=-1)
    compressed_next = pwn @ npdict
    p = predicted_next[:, :MIN_DIM]
    c = compressed_next[:, :MIN_DIM]
    pred_error = jnp.mean((c - p) ** 2, axis=1, keepdims=True)
    pred_certainty = jnp.abs(pred_error - jnp.mean(pred_error))
    temperature = jax.nn.sigmoid(pred_certainty)
    confidence = 0.5 * (jnp.tanh(-pred_error * temperature) + 1.0)
    routing_cost = 0.1 * jnp.mean(confidence * (1.0 - confidence))
    pred_error = pred_error + routing_cost
    pen = (hidden @ wp.T + bp) * confidence
    cont = hidden * (1.0 - confidence)
    return cont, pen, pred_error


def _init_params(key):
    ks = jax.random.split(key, 12)

    def lin(kw, kb, out_f, in_f):
        bound = 1.0 / (in_f ** 0.5)
        w = jax.random.uniform(kw, (out_f, in_f), jnp.float32, -bound, bound)
        b = jax.random.uniform(kb, (1, out_f), jnp.float32, -bound, bound)
        return w, b

    w1, b1 = lin(ks[0], ks[1], HID_DIM, IN_DIM)              # self.process
    wa, ba = lin(ks[2], ks[3], N_PAT, HID_DIM)               # self.pattern_attention
    pdict = jax.random.normal(ks[4], (N_PAT, HID_DIM), jnp.float32) / (HID_DIM ** 0.5)
    wp, bp = lin(ks[5], ks[6], PEN_DIM, HID_DIM)             # self.to_penultimate
    w2, b2 = lin(ks[7], ks[8], NXT_HID, HID_DIM)             # next_layer.process
    wna, bna = lin(ks[9], ks[10], N_PAT, NXT_HID)            # next_layer.next_pattern_attention
    npdict = jax.random.normal(ks[11], (N_PAT, NXT_NEXT), jnp.float32) / (NXT_NEXT ** 0.5)
    return (w1, b1, wa, ba, pdict, wp, bp, w2, b2, wna, bna, npdict)


if __name__ == "__main__":
    key = jax.random.PRNGKey(0)
    kx, kp = jax.random.split(key)
    x = jax.random.normal(kx, (B, IN_DIM), jnp.float32)
    params = _init_params(kp)

    # pack once (outside the jitted per-call path), reuse across calls
    wslab = jax.block_until_ready(pack_params(params))

    fwd = jax.jit(discrete_pattern_layer_forward)
    cont, pen, err = fwd(x, wslab)
    jax.block_until_ready((cont, pen, err))

    # sanity check vs pure-JAX f32 reference (tolerance covers bf16 weights/activations
    # and the approx-reciprocal softmax denominators)
    cont_r, pen_r, err_r = _reference(x, params)
    assert jnp.allclose(cont, cont_r, atol=2e-2, rtol=2e-2)
    assert jnp.allclose(pen, pen_r, atol=2e-2, rtol=2e-2)
    assert jnp.allclose(err, err_r, atol=2e-2, rtol=2e-2)

    print("KERNEL_OK")
</pallas_src>

<mosaic_0001>
module attributes {stable_mosaic.version = 11 : i64} {
  func.func @_dpl_kernel(%arg0: memref<4x16xbf16, #tpu.memory_space<vmem>>, %arg1: memref<128x128xbf16, #tpu.memory_space<vmem>>, %arg2: memref<4x128xf32, #tpu.memory_space<vmem>>) attributes {dimension_semantics = [], scalar_prefetch = 0 : i64, scratch_operands = 0 : i64, tpu.core_type = #tpu.core_type<tc>} {
    %c0 = arith.constant 0 : index
    %c0_0 = arith.constant 0 : index
    %0 = vector.load %arg0[%c0, %c0_0] : memref<4x16xbf16, #tpu.memory_space<vmem>>, vector<4x16xbf16>
    %c0_1 = arith.constant 0 : index
    %c0_2 = arith.constant 0 : index
    %1 = vector.load %arg1[%c0_1, %c0_2] : memref<128x128xbf16, #tpu.memory_space<vmem>>, vector<16x32xbf16>
    %c16 = arith.constant 16 : index
    %c0_3 = arith.constant 0 : index
    %2 = vector.load %arg1[%c16, %c0_3] : memref<128x128xbf16, #tpu.memory_space<vmem>>, vector<32x88xbf16>
    %c48 = arith.constant 48 : index
    %c0_4 = arith.constant 0 : index
    %3 = vector.load %arg1[%c48, %c0_4] : memref<128x128xbf16, #tpu.memory_space<vmem>>, vector<48x8xbf16>
    %c96 = arith.constant 96 : index
    %c0_5 = arith.constant 0 : index
    %4 = vector.load %arg1[%c96, %c0_5] : memref<128x128xbf16, #tpu.memory_space<vmem>>, vector<16x24xbf16>
    %c112 = arith.constant 112 : index
    %c0_6 = arith.constant 0 : index
    %5 = vector.load %arg1[%c112, %c0_6] : memref<128x128xbf16, #tpu.memory_space<vmem>>, vector<16x128xbf16>
    %6 = arith.extf %5 : vector<16x128xbf16> to vector<16x128xf32>
    %7 = vector.extract_strided_slice %6 {offsets = [0, 0], sizes = [1, 128], strides = [1, 1]} : vector<16x128xf32> to vector<1x128xf32>
    %8 = vector.extract_strided_slice %7 {offsets = [0, 0], sizes = [1, 32], strides = [1, 1]} : vector<1x128xf32> to vector<1x32xf32>
    %9 = vector.extract_strided_slice %7 {offsets = [0, 32], sizes = [1, 88], strides = [1, 1]} : vector<1x128xf32> to vector<1x88xf32>
    %10 = vector.extract_strided_slice %7 {offsets = [0, 120], sizes = [1, 8], strides = [1, 1]} : vector<1x128xf32> to vector<1x8xf32>
    %cst = arith.constant dense<0.000000e+00> : vector<4x32xf32>
    %11 = tpu.matmul %0, %1, %cst {dimension_numbers = #tpu.dot_dimension_numbers<[1], [0], [0], [1], [0, 0, 1, 1], [], []>} : vector<4x16xbf16>, vector<16x32xbf16>, vector<4x32xf32> -> vector<4x32xf32>
    %12 = vector.broadcast %8 : vector<1x32xf32> to vector<4x32xf32>
    %13 = arith.addf %11, %12 : vector<4x32xf32>
    %cst_7 = arith.constant 0.000000e+00 : f32
    %14 = vector.broadcast %cst_7 : f32 to vector<4x32xf32>
    %15 = arith.maximumf %13, %14 : vector<4x32xf32>
    %16 = arith.truncf %15 : vector<4x32xf32> to vector<4x32xbf16>
    %cst_8 = arith.constant dense<0.000000e+00> : vector<4x88xf32>
    %17 = tpu.matmul %16, %2, %cst_8 {dimension_numbers = #tpu.dot_dimension_numbers<[1], [0], [0], [1], [0, 0, 1, 1], [], []>} : vector<4x32xbf16>, vector<32x88xbf16>, vector<4x88xf32> -> vector<4x88xf32>
    %18 = vector.broadcast %9 : vector<1x88xf32> to vector<4x88xf32>
    %19 = arith.addf %17, %18 : vector<4x88xf32>
    %20 = vector.extract_strided_slice %19 {offsets = [0, 0], sizes = [4, 48], strides = [1, 1]} : vector<4x88xf32> to vector<4x48xf32>
    %cst_9 = arith.constant 0.000000e+00 : f32
    %21 = vector.broadcast %cst_9 : f32 to vector<4x48xf32>
    %22 = arith.maximumf %20, %21 : vector<4x48xf32>
    %23 = vector.extract_strided_slice %19 {offsets = [0, 48], sizes = [4, 8], strides = [1, 1]} : vector<4x88xf32> to vector<4x8xf32>
    %24 = vector.extract_strided_slice %19 {offsets = [0, 56], sizes = [4, 32], strides = [1, 1]} : vector<4x88xf32> to vector<4x32xf32>
    %cst_10 = arith.constant dense<0xFF800000> : vector<4xf32>
    %25 = vector.multi_reduction <maximumf>, %23, %cst_10 [1] : vector<4x8xf32> to vector<4xf32>
    %26 = vector.shape_cast %25 : vector<4xf32> to vector<4x1xf32>
    %27 = vector.broadcast %26 : vector<4x1xf32> to vector<4x8xf32>
    %28 = arith.subf %23, %27 : vector<4x8xf32>
    %29 = math.exp %28 : vector<4x8xf32>
    %cst_11 = arith.constant dense<0.000000e+00> : vector<4xf32>
    %30 = vector.multi_reduction <add>, %29, %cst_11 [1] : vector<4x8xf32> to vector<4xf32>
    %31 = vector.shape_cast %30 : vector<4xf32> to vector<4x1xf32>
    %32 = tpu.reciprocal %31 {approx = true} : vector<4x1xf32> -> vector<4x1xf32>
    %33 = vector.broadcast %32 : vector<4x1xf32> to vector<4x8xf32>
    %34 = arith.mulf %29, %33 : vector<4x8xf32>
    %35 = arith.truncf %22 : vector<4x48xf32> to vector<4x48xbf16>
    %cst_12 = arith.constant dense<0.000000e+00> : vector<4x8xf32>
    %36 = tpu.matmul %35, %3, %cst_12 {dimension_numbers = #tpu.dot_dimension_numbers<[1], [0], [0], [1], [0, 0, 1, 1], [], []>} : vector<4x48xbf16>, vector<48x8xbf16>, vector<4x8xf32> -> vector<4x8xf32>
    %37 = vector.broadcast %10 : vector<1x8xf32> to vector<4x8xf32>
    %38 = arith.addf %36, %37 : vector<4x8xf32>
    %cst_13 = arith.constant dense<0xFF800000> : vector<4xf32>
    %39 = vector.multi_reduction <maximumf>, %38, %cst_13 [1] : vector<4x8xf32> to vector<4xf32>
    %40 = vector.shape_cast %39 : vector<4xf32> to vector<4x1xf32>
    %41 = vector.broadcast %40 : vector<4x1xf32> to vector<4x8xf32>
    %42 = arith.subf %38, %41 : vector<4x8xf32>
    %43 = math.exp %42 : vector<4x8xf32>
    %cst_14 = arith.constant dense<0.000000e+00> : vector<4xf32>
    %44 = vector.multi_reduction <add>, %43, %cst_14 [1] : vector<4x8xf32> to vector<4xf32>
    %45 = vector.shape_cast %44 : vector<4xf32> to vector<4x1xf32>
    %46 = tpu.reciprocal %45 {approx = true} : vector<4x1xf32> -> vector<4x1xf32>
    %47 = vector.broadcast %46 : vector<4x1xf32> to vector<4x8xf32>
    %48 = arith.mulf %43, %47 : vector<4x8xf32>
    %49 = tpu.concatenate %34, %48 in 1 : vector<4x8xf32>, vector<4x8xf32> -> vector<4x16xf32>
    %50 = arith.truncf %49 : vector<4x16xf32> to vector<4x16xbf16>
    %cst_15 = arith.constant dense<0.000000e+00> : vector<4x24xf32>
    %51 = tpu.matmul %50, %4, %cst_15 {dimension_numbers = #tpu.dot_dimension_numbers<[1], [0], [0], [1], [0, 0, 1, 1], [], []>} : vector<4x16xbf16>, vector<16x24xbf16>, vector<4x24xf32> -> vector<4x24xf32>
    %52 = arith.mulf %51, %51 : vector<4x24xf32>
    %cst_16 = arith.constant dense<0.000000e+00> : vector<4xf32>
    %53 = vector.multi_reduction <add>, %52, %cst_16 [1] : vector<4x24xf32> to vector<4xf32>
    %54 = vector.shape_cast %53 : vector<4xf32> to vector<4x1xf32>
    %cst_17 = arith.constant 2.400000e+01 : f32
    %55 = vector.broadcast %cst_17 : f32 to vector<4x1xf32>
    %56 = arith.divf %54, %55 : vector<4x1xf32>
    %57 = vector.shape_cast %56 : vector<4x1xf32> to vector<1x4x1xf32>
    %cst_18 = arith.constant dense<0.000000e+00> : vector<1xf32>
    %58 = vector.multi_reduction <add>, %57, %cst_18 [1, 2] : vector<1x4x1xf32> to vector<1xf32>
    %59 = vector.shape_cast %58 : vector<1xf32> to vector<1x1x1xf32>
    %60 = vector.extract %59[0, 0, 0] : f32 from vector<1x1x1xf32>
    %cst_19 = arith.constant 4.000000e+00 : f32
    %61 = arith.divf %60, %cst_19 : f32
    %62 = vector.broadcast %61 : f32 to vector<4x1xf32>
    %63 = arith.subf %56, %62 : vector<4x1xf32>
    %64 = math.absf %63 : vector<4x1xf32>
    %65 = arith.negf %64 : vector<4x1xf32>
    %66 = math.exp %65 : vector<4x1xf32>
    %cst_20 = arith.constant 1.000000e+00 : f32
    %67 = vector.broadcast %cst_20 : f32 to vector<4x1xf32>
    %68 = arith.addf %67, %66 : vector<4x1xf32>
    %69 = arith.divf %67, %68 : vector<4x1xf32>
    %cst_21 = arith.constant 0.000000e+00 : f32
    %70 = vector.broadcast %cst_21 : f32 to vector<4x1xf32>
    %71 = arith.subf %70, %56 : vector<4x1xf32>
    %72 = arith.mulf %71, %69 : vector<4x1xf32>
    %73 = math.tanh %72 : vector<4x1xf32>
    %cst_22 = arith.constant 1.000000e+00 : f32
    %74 = vector.broadcast %cst_22 : f32 to vector<4x1xf32>
    %75 = arith.addf %73, %74 : vector<4x1xf32>
    %cst_23 = arith.constant 5.000000e-01 : f32
    %76 = vector.broadcast %cst_23 : f32 to vector<4x1xf32>
    %77 = arith.mulf %76, %75 : vector<4x1xf32>
    %cst_24 = arith.constant 1.000000e+00 : f32
    %78 = vector.broadcast %cst_24 : f32 to vector<4x1xf32>
    %79 = arith.subf %78, %77 : vector<4x1xf32>
    %80 = arith.mulf %77, %79 : vector<4x1xf32>
    %81 = vector.shape_cast %80 : vector<4x1xf32> to vector<1x4x1xf32>
    %cst_25 = arith.constant dense<0.000000e+00> : vector<1xf32>
    %82 = vector.multi_reduction <add>, %81, %cst_25 [1, 2] : vector<1x4x1xf32> to vector<1xf32>
    %83 = vector.shape_cast %82 : vector<1xf32> to vector<1x1x1xf32>
    %84 = vector.extract %83[0, 0, 0] : f32 from vector<1x1x1xf32>
    %cst_26 = arith.constant 4.000000e+00 : f32
    %85 = arith.divf %84, %cst_26 : f32
    %cst_27 = arith.constant 1.000000e-01 : f32
    %86 = arith.mulf %cst_27, %85 : f32
    %87 = vector.broadcast %86 : f32 to vector<4x1xf32>
    %88 = arith.addf %56, %87 : vector<4x1xf32>
    %cst_28 = arith.constant 1.000000e+00 : f32
    %89 = vector.broadcast %cst_28 : f32 to vector<4x1xf32>
    %90 = arith.subf %89, %77 : vector<4x1xf32>
    %91 = vector.broadcast %90 : vector<4x1xf32> to vector<4x32xf32>
    %92 = arith.mulf %15, %91 : vector<4x32xf32>
    %93 = vector.broadcast %77 : vector<4x1xf32> to vector<4x32xf32>
    %94 = arith.mulf %24, %93 : vector<4x32xf32>
    %95 = vector.shape_cast %88 : vector<4x1xf32> to vector<4x1xf32>
    %96 = vector.broadcast %95 : vector<4x1xf32> to vector<4x64xf32>
    %97 = tpu.concatenate %92, %94, %96 in 1 : vector<4x32xf32>, vector<4x32xf32>, vector<4x64xf32> -> vector<4x128xf32>
    %c0_29 = arith.constant 0 : index
    %c0_30 = arith.constant 0 : index
    %98 = vector.load %arg2[%c0_29, %c0_30] : memref<4x128xf32, #tpu.memory_space<vmem>>, vector<4x128xf32>
    tpu.vector_store %arg2[%c0_29, %c0_30], %97 {strides = array<i32>} : memref<4x128xf32, #tpu.memory_space<vmem>>, vector<4x128xf32>,
    return
  }
}

</mosaic_0001>

<llo_original>
// kernel: discrete_pattern_layer_forward.1
$region0: #{discrete_pattern_layer_forward.1}
  #allocation0 [shape = 'u32[]', space=smem, size = 0x4, offset = 0x4, fixed_abs, tag = 'smem constant byte address 0x4 - core index']
  #allocation1 [shape = 'u32[144,128]{1,0:T(1,128)}', space=vmem, size = 0x12000, scoped, tag = 'internal scratch']
  %s0 = inlined_call_operand.vmem [shape: bf16[4,16], index: 0, kind: input, shape index: {}]
  %s1 = inlined_call_operand.hbm [shape: bf16[128,128], index: 1, kind: input, shape index: {}]
  %s2 = inlined_call_operand.vmem [shape: f32[4,128], index: 2, kind: output, shape index: {}]
  %s3 = sld [smem:[#allocation0]]
  $region22: #{discrete_pattern_layer_forward.1} parent=0
    _
  %s5 = ssub.s32 1, %s3
  %s6 = scalar_select 0, %s5, %s3
  $region1: #{discrete_pattern_layer_forward.1} parent=0
    #allocation2 [shape = 'u8[32768]{0}', space=vmem, size = 0x8000, scoped, tag = 'input window, operand 1, single buffered']
    #allocation3 [shape = 's32[1]{0}', space=sflag, size = 0x4, scoped, tag = 'scoped memory for discrete_pattern_layer_forward.1']
    %7 = vsyncpa [#allocation3], 0
    // Predicated region
    $region2: #{discrete_pattern_layer_forward.1} parent=1 // pred_check
      _
    $region3: #{discrete_pattern_layer_forward.1} parent=1 // pred_check_branch
      %9 = sbr.rel (0) target = $region5
    $region4: #{discrete_pattern_layer_forward.1} parent=1 // pred_region
      _
    $region5: #{discrete_pattern_layer_forward.1} parent=1 // pred_fallthru
      _
    // Predicated region
    $region6: #{discrete_pattern_layer_forward.1} parent=1 // pred_check
      _
    $region7: #{discrete_pattern_layer_forward.1} parent=1 // pred_check_branch
      %11 = sbr.rel (0) target = $region9
    $region8: #{discrete_pattern_layer_forward.1} parent=1 // pred_region
      %s13 = ssub.s32 1024, 1024
      %14 = vsyncadd [#allocation3], %s13
      %s15 = sshll.u32 [#allocation2], 4
      %s16 = int_to_ptr.vmem [resolvable:$true] %s15
      %21 = dma.hbm_to_vmem [thread:$0]  %s1, 1024, %s16, [#allocation3], 64, 64, 4
    $region9: #{discrete_pattern_layer_forward.1} parent=1 // pred_fallthru
      _
    // Predicated region
    $region10: #{discrete_pattern_layer_forward.1} parent=1 // pred_check
      _
    $region11: #{discrete_pattern_layer_forward.1} parent=1 // pred_check_branch
      %23 = sbr.rel (0) target = $region13
    $region12: #{discrete_pattern_layer_forward.1} parent=1 // pred_region
      %24 = dma.done [#allocation3], 1024
    $region13: #{discrete_pattern_layer_forward.1} parent=1 // pred_fallthru
      _
    %v26 = vld [vmem:[%s0] sm:$0x3]
    %v27 = vld [vmem:[#allocation2] sm:$0xf]
    %v28 = vld [vmem:[#allocation2 + $0x4] sm:$0xf]
    %v29 = vld [vmem:[#allocation2 + $0x8] sm:$0xf]
    %v30 = vld [vmem:[#allocation2 + $0xc] sm:$0xf]
    %v31 = vld [vmem:[#allocation2 + $0x10] sm:$0xf]
    %v32 = vld [vmem:[#allocation2 + $0x14] sm:$0xf]
    %v33 = vld [vmem:[#allocation2 + $0x18] sm:$0xf]
    %v34 = vld [vmem:[#allocation2 + $0x1c] sm:$0xf]
    %v35 = vld [vmem:[#allocation2 + $0x20] sm:$0xf]
    %v36 = vld [vmem:[#allocation2 + $0x24] sm:$0xf]
    %v37 = vld [vmem:[#allocation2 + $0x28] sm:$0xf]
    %v38 = vld [vmem:[#allocation2 + $0x2c] sm:$0xf]
    %v39 = vld [vmem:[#allocation2 + $0x30] sm:$0xf]
    %v40 = vld [vmem:[#allocation2 + $0x34] sm:$0xf]
    %v41 = vld [vmem:[#allocation2 + $0x38] sm:$0xf]
    %v42 = vunpack.c.l.bf16 %v41
    %v43 = vlaneseq
    %v44 = vshrl.u32 %v43, 7
    %v45 = vsub.s32 0, %v44
    %v46 = vrot.slane %v42, %v45
    %v49 = vunpack.c.l.b16 %v27
    %v50 = vunpack.c.l.b16 %v28
    %v51 = vpack.c.b16 %v50, %v49
    %vm53 = vcmask 130048
    %v55 = vsel %vm53, %v26, 0
    %57 = vmatprep.subr.bf16.mxu0 0
    %58 = vmatpush1.bf16.msra.mxu0 %v51
    %59 = vmatprep.subr.bf16.mxu0 0
    %60 = vmatpush1.bf16.msra.mxu0 0
    %61 = vmatprep.subr.bf16.mxu0 0
    %62 = vmatpush1.bf16.msra.mxu0 0
    %63 = vmatprep.subr.bf16.mxu0 0
    %64 = vmatpush1.bf16.msra.mxu0 0
    %65 = vmatprep.subr.bf16.mxu0 0
    %66 = vmatpush1.bf16.msra.mxu0 0
    %67 = vmatprep.subr.bf16.mxu0 0
    %68 = vmatpush1.bf16.msra.mxu0 0
    %69 = vmatprep.subr.bf16.mxu0 0
    %70 = vmatpush1.bf16.msra.mxu0 0
    %71 = vmatprep.subr.bf16.mxu0 0
    %72 = vmatpush1.bf16.msra.mxu0 0
    %73 = vmatprep.subr.bf16.mxu0 0
    %74 = vmatpush1.bf16.msra.mxu0 0
    %75 = vmatprep.subr.bf16.mxu0 0
    %76 = vmatpush1.bf16.msra.mxu0 0
    %77 = vmatprep.subr.bf16.mxu0 0
    %78 = vmatpush1.bf16.msra.mxu0 0
    %79 = vmatprep.subr.bf16.mxu0 0
    %80 = vmatpush1.bf16.msra.mxu0 0
    %81 = vmatprep.subr.bf16.mxu0 0
    %82 = vmatpush1.bf16.msra.mxu0 0
    %83 = vmatprep.subr.bf16.mxu0 0
    %84 = vmatpush1.bf16.msra.mxu0 0
    %85 = vmatprep.subr.bf16.mxu0 0
    %86 = vmatpush1.bf16.msra.mxu0 0
    %87 = vmatprep.subr.bf16.mxu0 0
    %88 = vmatpush1.bf16.msra.mxu0 0
    %89 = vmatprep.mubr.bf16.mxu0 0
    %90 = vmatmul.mubr.bf16.gmra.mrb[0].mxu0 %v55
    %v91 = vpop.f32.mrb[0].mxu0
    %v92 = vadd.f32 %v46, %v91
    %v93 = vpop.f32.mrb[0].mxu0
    %v94 = vpop.f32.mrb[0].mxu0
    %v95 = vpop.f32.mrb[0].mxu0
    %96 = vdwg.mxu0
    %v97 = vmax.f32 %v92, 0.0
    %v98 = vpack.c.bf16 %v97, %v97
    %v103 = vunpack.c.l.b16 %v29
    %v104 = vunpack.c.l.b16 %v30
    %v105 = vunpack.c.l.b16 %v31
    %v106 = vunpack.c.l.b16 %v32
    %v107 = vpack.c.b16 %v104, %v103
    %v108 = vpack.c.b16 %v106, %v105
    %112 = vrot.lane.b32.xlu0 %v46, 96
    %v113 = vpop.permute.xlu0 %112
    %vm115 = vcmask 261120
    %v117 = vsel %vm115, %v98, 0
    %119 = vmatprep.subr.bf16.mxu0 0
    %120 = vmatpush1.bf16.msra.mxu0 %v107
    %121 = vmatprep.subr.bf16.mxu0 0
    %122 = vmatpush1.bf16.msra.mxu0 %v108
    %123 = vmatprep.subr.bf16.mxu0 0
    %124 = vmatpush1.bf16.msra.mxu0 0
    %125 = vmatprep.subr.bf16.mxu0 0
    %126 = vmatpush1.bf16.msra.mxu0 0
    %127 = vmatprep.subr.bf16.mxu0 0
    %128 = vmatpush1.bf16.msra.mxu0 0
    %129 = vmatprep.subr.bf16.mxu0 0
    %130 = vmatpush1.bf16.msra.mxu0 0
    %131 = vmatprep.subr.bf16.mxu0 0
    %132 = vmatpush1.bf16.msra.mxu0 0
    %133 = vmatprep.subr.bf16.mxu0 0
    %134 = vmatpush1.bf16.msra.mxu0 0
    %135 = vmatprep.subr.bf16.mxu0 0
    %136 = vmatpush1.bf16.msra.mxu0 0
    %137 = vmatprep.subr.bf16.mxu0 0
    %138 = vmatpush1.bf16.msra.mxu0 0
    %139 = vmatprep.subr.bf16.mxu0 0
    %140 = vmatpush1.bf16.msra.mxu0 0
    %141 = vmatprep.subr.bf16.mxu0 0
    %142 = vmatpush1.bf16.msra.mxu0 0
    %143 = vmatprep.subr.bf16.mxu0 0
    %144 = vmatpush1.bf16.msra.mxu0 0
    %145 = vmatprep.subr.bf16.mxu0 0
    %146 = vmatpush1.bf16.msra.mxu0 0
    %147 = vmatprep.subr.bf16.mxu0 0
    %148 = vmatpush1.bf16.msra.mxu0 0
    %149 = vmatprep.subr.bf16.mxu0 0
    %150 = vmatpush1.bf16.msra.mxu0 0
    %151 = vmatprep.mubr.bf16.mxu0 0
    %152 = vmatmul.mubr.bf16.gmra.mrb[0].mxu0 %v117
    %v153 = vpop.f32.mrb[0].mxu0
    %v154 = vadd.f32 %v113, %v153
    %v155 = vpop.f32.mrb[0].mxu0
    %v156 = vpop.f32.mrb[0].mxu0
    %v157 = vpop.f32.mrb[0].mxu0
    %158 = vdwg.mxu0
    %v159 = vmax.f32 %v154, 0.0
    %vm160 = vcmask 454016
    %v161 = vsel %vm160, %v154, -inf
    %162 = vmax.xlane.f32.xlu0 %v161
    %v163 = vpop.xlane.xlu0 %162
    %v164 = vsub.f32 %v154, %v163
    %v165 = vmul.f32 %v164, 1.442695
    %v166 = vpow.pop %v165
    %168 = vrot.lane.b32.xlu0 %v166, 80
    %v169 = vpop.permute.xlu0 %168
    %vm171 = vcmask 60416
    %v172 = vsel %vm171, %v169, 0.0
    %173 = vadd.xlane.f32.xlu0 %v172
    %v174 = vpop.xlane.xlu0 %173
    %v175 = vrcp.pop %v174
    %v176 = vmul.f32 %v166, %v175
    %v177 = vpack.c.bf16 %v159, %v159
    %v184 = vunpack.c.l.b16 %v33
    %v185 = vunpack.c.l.b16 %v34
    %v186 = vunpack.c.l.b16 %v35
    %v187 = vunpack.c.l.b16 %v36
    %v188 = vunpack.c.l.b16 %v37
    %v189 = vunpack.c.l.b16 %v38
    %v190 = vpack.c.b16 %v185, %v184
    %v191 = vpack.c.b16 %v187, %v186
    %v192 = vpack.c.b16 %v189, %v188
    %196 = vrot.lane.b32.xlu0 %v46, 8
    %v197 = vpop.permute.xlu0 %196
    %vm199 = vcmask 392192
    %v201 = vsel %vm199, %v177, 0
    %203 = vmatprep.subr.bf16.mxu0 0
    %204 = vmatpush1.bf16.msra.mxu0 %v190
    %205 = vmatprep.subr.bf16.mxu0 0
    %206 = vmatpush1.bf16.msra.mxu0 %v191
    %207 = vmatprep.subr.bf16.mxu0 0
    %208 = vmatpush1.bf16.msra.mxu0 %v192
    %209 = vmatprep.subr.bf16.mxu0 0
    %210 = vmatpush1.bf16.msra.mxu0 0
    %211 = vmatprep.subr.bf16.mxu0 0
    %212 = vmatpush1.bf16.msra.mxu0 0
    %213 = vmatprep.subr.bf16.mxu0 0
    %214 = vmatpush1.bf16.msra.mxu0 0
    %215 = vmatprep.subr.bf16.mxu0 0
    %216 = vmatpush1.bf16.msra.mxu0 0
    %217 = vmatprep.subr.bf16.mxu0 0
    %218 = vmatpush1.bf16.msra.mxu0 0
    %219 = vmatprep.subr.bf16.mxu0 0
    %220 = vmatpush1.bf16.msra.mxu0 0
    %221 = vmatprep.subr.bf16.mxu0 0
    %222 = vmatpush1.bf16.msra.mxu0 0
    %223 = vmatprep.subr.bf16.mxu0 0
    %224 = vmatpush1.bf16.msra.mxu0 0
    %225 = vmatprep.subr.bf16.mxu0 0
    %226 = vmatpush1.bf16.msra.mxu0 0
    %227 = vmatprep.subr.bf16.mxu0 0
    %228 = vmatpush1.bf16.msra.mxu0 0
    %229 = vmatprep.subr.bf16.mxu0 0
    %230 = vmatpush1.bf16.msra.mxu0 0
    %231 = vmatprep.subr.bf16.mxu0 0
    %232 = vmatpush1.bf16.msra.mxu0 0
    %233 = vmatprep.subr.bf16.mxu0 0
    %234 = vmatpush1.bf16.msra.mxu0 0
    %235 = vmatprep.mubr.bf16.mxu0 0
    %236 = vmatmul.mubr.bf16.gmra.mrb[0].mxu0 %v201
    %v237 = vpop.f32.mrb[0].mxu0
    %v238 = vadd.f32 %v197, %v237
    %v239 = vpop.f32.mrb[0].mxu0
    %v240 = vpop.f32.mrb[0].mxu0
    %v241 = vpop.f32.mrb[0].mxu0
    %242 = vdwg.mxu0
    %v243 = vsel %vm171, %v238, -inf
    %244 = vmax.xlane.f32.xlu0 %v243
    %v245 = vpop.xlane.xlu0 %244
    %v246 = vsub.f32 %v238, %v245
    %v247 = vmul.f32 %v246, 1.442695
    %v248 = vpow.pop %v247
    %v249 = vsel %vm171, %v248, 0.0
    %250 = vadd.xlane.f32.xlu0 %v249
    %v251 = vpop.xlane.xlu0 %250
    %v252 = vrcp.pop %v251
    %v253 = vmul.f32 %v248, %v252
    %255 = vrot.lane.b32.xlu0 %v176, 80
    %v256 = vpop.permute.xlu0 %255
    %259 = vrot.lane.b32.xlu0 %v253, 8
    %v260 = vpop.permute.xlu0 %259
    %vm262 = vcmask 64512
    %v263 = vsel %vm262, %v256, %v260
    %v264 = vpack.c.bf16 %v263, %v263
    %v267 = vunpack.c.l.b16 %v39
    %v268 = vunpack.c.l.b16 %v40
    %v269 = vpack.c.b16 %v268, %v267
    %v272 = vsel %vm53, %v264, 0
    %274 = vmatprep.subr.bf16.mxu0 0
    %275 = vmatpush1.bf16.msra.mxu0 %v269
    %276 = vmatprep.subr.bf16.mxu0 0
    %277 = vmatpush1.bf16.msra.mxu0 0
    %278 = vmatprep.subr.bf16.mxu0 0
    %279 = vmatpush1.bf16.msra.mxu0 0
    %280 = vmatprep.subr.bf16.mxu0 0
    %281 = vmatpush1.bf16.msra.mxu0 0
    %282 = vmatprep.subr.bf16.mxu0 0
    %283 = vmatpush1.bf16.msra.mxu0 0
    %284 = vmatprep.subr.bf16.mxu0 0
    %285 = vmatpush1.bf16.msra.mxu0 0
    %286 = vmatprep.subr.bf16.mxu0 0
    %287 = vmatpush1.bf16.msra.mxu0 0
    %288 = vmatprep.subr.bf16.mxu0 0
    %289 = vmatpush1.bf16.msra.mxu0 0
    %290 = vmatprep.subr.bf16.mxu0 0
    %291 = vmatpush1.bf16.msra.mxu0 0
    %292 = vmatprep.subr.bf16.mxu0 0
    %293 = vmatpush1.bf16.msra.mxu0 0
    %294 = vmatprep.subr.bf16.mxu0 0
    %295 = vmatpush1.bf16.msra.mxu0 0
    %296 = vmatprep.subr.bf16.mxu0 0
    %297 = vmatpush1.bf16.msra.mxu0 0
    %298 = vmatprep.subr.bf16.mxu0 0
    %299 = vmatpush1.bf16.msra.mxu0 0
    %300 = vmatprep.subr.bf16.mxu0 0
    %301 = vmatpush1.bf16.msra.mxu0 0
    %302 = vmatprep.subr.bf16.mxu0 0
    %303 = vmatpush1.bf16.msra.mxu0 0
    %304 = vmatprep.subr.bf16.mxu0 0
    %305 = vmatpush1.bf16.msra.mxu0 0
    %306 = vmatprep.mubr.bf16.mxu0 0
    %307 = vmatmul.mubr.bf16.gmra.mrb[0].mxu0 %v272
    %v308 = vpop.f32.mrb[0].mxu0
    %v309 = vadd.f32 0.0, %v308
    %v310 = vpop.f32.mrb[0].mxu0
    %v311 = vpop.f32.mrb[0].mxu0
    %v312 = vpop.f32.mrb[0].mxu0
    %313 = vdwg.mxu0
    %v314 = vmul.f32 %v309, %v309
    %vm315 = vcmask 191488
    %v316 = vsel %vm315, %v314, 0.0
    %317 = vadd.xlane.f32.xlu0 %v316
    %v318 = vpop.xlane.xlu0 %317
    %v319 = vrcp.pop 24.0
    %v320 = vmul.f32 %v318, %v319
    %vm321 = vcmask 3072
    %v322 = vsel %vm321, %v320, 0.0
    %323 = vadd.xlane.f32.xlu0 %v322
    %v324 = vpop.xlane.xlu0 %323
    %v325 = vrot.slane %v324, 4
    %v326 = vadd.f32 %v324, %v325
    %v327 = vrot.slane %v326, 2
    %v328 = vadd.f32 %v326, %v327
    %v329 = vrot.slane %v328, 1
    %v330 = vadd.f32 %v328, %v329
    %s331 = vtos %v330
    %v332 = vrcp.pop 4.0
    %s333 = vtos %v332
    %s334 = smul.f32 %s331, %s333
    %v335 = vstv %s334
    %v336 = vsub.f32 %v320, %v335
    %v337 = vand.u32 2147483647, %v336
    %v338 = vxor.u32 %v337, 2147483648
    %v339 = vmul.f32 %v338, 1.442695
    %v340 = vpow.pop %v339
    %v341 = vadd.f32 %v340, 1.0
    %v342 = vrcp.pop %v341
    %v343 = vmul.f32 1.0, %v342
    %v344 = vsub.f32 0.0, %v320
    %v345 = vmul.f32 %v344, %v343
    %v346 = vtanh.pop %v345
    %v347 = vadd.f32 %v346, 1.0
    %v348 = vmul.f32 %v347, 0.5
    %v349 = vsub.f32 1.0, %v348
    %v350 = vmul.f32 %v348, %v349
    %v351 = vsel %vm321, %v350, 0.0
    %352 = vadd.xlane.f32.xlu0 %v351
    %v353 = vpop.xlane.xlu0 %352
    %v354 = vrot.slane %v353, 4
    %v355 = vadd.f32 %v353, %v354
    %v356 = vrot.slane %v355, 2
    %v357 = vadd.f32 %v355, %v356
    %v358 = vrot.slane %v357, 1
    %v359 = vadd.f32 %v357, %v358
    %s360 = vtos %v359
    %v361 = vrcp.pop 4.0
    %s362 = vtos %v361
    %s363 = smul.f32 %s360, %s362
    %s364 = smul.f32 %s363, 0.1
    %v365 = vstv %s364
    %v366 = vadd.f32 %v320, %v365
    %v367 = vmul.f32 %v97, %v349
    %v368 = vmul.f32 %v154, %v348
    %370 = vrot.lane.b32.xlu0 %v368, 104
    %v371 = vpop.permute.xlu0 %370
    %v373 = vsel %vm115, %v367, %v371
    %vm374 = vcmask 523264
    %v375 = vsel %vm374, %v373, %v366
    %376 = vst [vmem:[%s2] sm:$0xf] %v375
    // Predicated region
    $region14: #{discrete_pattern_layer_forward.1} parent=1 // pred_check
      _
    $region15: #{discrete_pattern_layer_forward.1} parent=1 // pred_check_branch
      %378 = sbr.rel (0) target = $region17
    $region16: #{discrete_pattern_layer_forward.1} parent=1 // pred_region
      _
    $region17: #{discrete_pattern_layer_forward.1} parent=1 // pred_fallthru
      _
    // Predicated region
    $region18: #{discrete_pattern_layer_forward.1} parent=1 // pred_check
      _
    $region19: #{discrete_pattern_layer_forward.1} parent=1 // pred_check_branch
      %380 = sbr.rel (0) target = $region21
    $region20: #{discrete_pattern_layer_forward.1} parent=1 // pred_region
      _
    $region21: #{discrete_pattern_layer_forward.1} parent=1 // pred_fallthru
      _
    %381 = vsyncpa [#allocation3], 1

</llo_original>
